<compile_context>
chip_gen: v5e
topology: v5e:2x2
jax: 0.10.0
libtpu: 0.0.40
codegen_flags: <defaults>
</compile_context>

<pallas_src>
import functools
import math

import jax
import jax.numpy as jnp
import numpy as np
from jax import lax
from jax.experimental import pallas as pl
from jax.experimental.pallas import tpu as pltpu


# --------------------------------------------------------------------------
# Tiling / budgeting helpers
# --------------------------------------------------------------------------
def _round_up(x, m):
    return ((x + m - 1) // m) * m


def _vmem_limits():
    """(vmem_limit_bytes for Mosaic, tile-sizing budget) per generation."""
    phys = None
    try:
        info = pltpu.get_tpu_info()
        phys = getattr(info, "vmem_capacity_bytes", None)
    except Exception:
        phys = None
    if not phys:
        phys = 64 * 1024 * 1024          # conservative fallback: v7x per-TC VMEM
    return int(phys * 0.85), int(phys * 0.70)


def _divisor_tiles(seq_len, multiple):
    """Tile candidates (largest first) that divide seq_len and are either a
    multiple of `multiple` or the full extent (both satisfy the (8,128) rule)."""
    cands = [t for t in (2048, 1024, 512, 256, 128, 64, 32, 16, 8)
             if t % multiple == 0 and seq_len % t == 0]
    cands.append(seq_len)
    return sorted(set(cands), reverse=True)


def _pick_scores_tile(S, Dh, in_item, score_item, budget):
    tiles = _divisor_tiles(S, 8)
    for t in tiles:
        need = (2 * (t + S) * Dh * in_item       # double-buffered Q + K blocks
                + 2 * t * S * score_item         # double-buffered scores block
                + 4 * t * S)                     # f32 matmul result before cast
        if need <= budget:
            return t
    return tiles[-1]


def _pick_attn_tiles(S, Dh, r_pad, Hg, in_item, out_item, budget):
    tqs = _divisor_tiles(S, 8)
    tks = _divisor_tiles(S, 128)

    def need(tq, tk):
        return (2 * Hg * tq * r_pad * in_item    # U blocks (x2 buffers)
                + 2 * Hg * r_pad * tk * in_item  # Vh blocks
                + 2 * Hg * tk * Dh * in_item     # V blocks
                + 2 * tq * Hg * Dh * out_item    # output block
                + Hg * tq * (Dh + 2 * 128) * 4   # acc + m/l scratch (lane-padded)
                + 12 * tq * tk)                  # low/p f32 + p compute-dtype copy

    for tq in tqs:
        for tk in tks:
            if need(tq, tk) <= budget:
                return tq, tk
    return tqs[-1], tks[-1]


def _pick_head_group(n_heads, d_head):
    """Smallest head group whose fused output lane width is 128-aligned;
    fall back to all heads (lane width == d_model, the full extent)."""
    for hg in range(1, n_heads + 1):
        if n_heads % hg == 0 and (hg * d_head) % 128 == 0:
            return hg
    return n_heads


# --------------------------------------------------------------------------
# Kernel 1: unscaled Q @ K^T (scale folded into singular values downstream)
# --------------------------------------------------------------------------
def _scores_kernel(q_ref, k_ref, s_ref):
    # q_ref: [1,1,Tq,Dh]   k_ref: [1,1,S,Dh]   s_ref: [1,1,Tq,S]
    s_ref[0, 0] = lax.dot_general(
        q_ref[0, 0], k_ref[0, 0],
        dimension_numbers=(((1,), (1,)), ((), ())),    # NT: no K transpose
        preferred_element_type=jnp.float32,
    ).astype(s_ref.dtype)


# --------------------------------------------------------------------------
# Kernel 2: low-rank reconstruction + online softmax + attn @ V
#           (head-grouped, k-tiled, lane-dense [B,S,D] output)
# --------------------------------------------------------------------------
def _attn_kernel(u_ref, vh_ref, v_ref, o_ref, m_sc, l_sc, acc_sc, *,
                 approx_recip):
    # u_ref : [1,Hg,Tq,r]   vh_ref: [1,Hg,r,Tk]   v_ref: [1,Hg,Tk,Dh]
    # o_ref : [1,Tq,Hg*Dh]  scratch: m/l [Hg,Tq,1] f32, acc [Hg,Tq,Dh] f32
    kk = pl.program_id(3)
    n_k = pl.num_programs(3)
    hg = u_ref.shape[1]
    dh = v_ref.shape[3]

    @pl.when(kk == 0)
    def _init():
        m_sc[...] = jnp.full_like(m_sc, -jnp.inf)
        l_sc[...] = jnp.zeros_like(l_sc)
        acc_sc[...] = jnp.zeros_like(acc_sc)

    for h in range(hg):                       # Hg is small (<= 128/Dh or H)
        # Low-rank reconstruction of this (q, k) tile's score rows.
        low = jnp.dot(u_ref[0, h], vh_ref[0, h],
                      preferred_element_type=jnp.float32)       # [Tq, Tk] f32
        m_prev = m_sc[h]
        m_new = jnp.maximum(m_prev, jnp.max(low, axis=-1, keepdims=True))
        alpha = jnp.exp(m_prev - m_new)
        p = jnp.exp(low - m_new)
        l_sc[h] = alpha * l_sc[h] + jnp.sum(p, axis=-1, keepdims=True)
        acc_sc[h] = alpha * acc_sc[h] + jnp.dot(
            p.astype(v_ref.dtype), v_ref[0, h],
            preferred_element_type=jnp.float32)                 # [Tq, Dh] f32
        m_sc[h] = m_new

    @pl.when(kk == n_k - 1)
    def _finalize():
        for h in range(hg):
            inv_l = pl.reciprocal(l_sc[h], approx=approx_recip)
            o_ref[0, :, h * dh:(h + 1) * dh] = (
                acc_sc[h] * inv_l).astype(o_ref.dtype)


# --------------------------------------------------------------------------
# Wrapper
# --------------------------------------------------------------------------
def low_rank_attention(query, key, value, *, n_heads, rank_ratio=0.1,
                       max_rank=256, compute_dtype=jnp.bfloat16,
                       scores_dtype=None):
    """JAX/Pallas equivalent of LowRankAttention.forward."""
    B, S, D = query.shape
    Dh = D // n_heads
    scale = 1.0 / math.sqrt(Dh)
    out_dtype = query.dtype

    cd = jnp.dtype(compute_dtype)
    is_f32 = cd == jnp.dtype(jnp.float32)
    score_dtype = jnp.dtype(scores_dtype) if scores_dtype is not None else cd
    in_item = cd.itemsize
    score_item = score_dtype.itemsize
    out_item = jnp.dtype(out_dtype).itemsize

    vmem_limit, vmem_budget = _vmem_limits()

    def to_heads(x):
        return jnp.transpose(x.reshape(B, S, n_heads, Dh), (0, 2, 1, 3))

    Q = to_heads(query).astype(cd)
    K = to_heads(key).astype(cd)
    V = to_heads(value).astype(cd)

    # ---- Kernel 1: unscaled QK^T (bf16 MXU, f32 acc, bf16 scores writeback).
    tq1 = _pick_scores_tile(S, Dh, in_item, score_item, vmem_budget)
    n_q1 = S // tq1

    scores = pl.pallas_call(
        _scores_kernel,
        out_shape=jax.ShapeDtypeStruct((B, n_heads, S, S), score_dtype),
        grid=(B, n_heads, n_q1),
        in_specs=[pl.BlockSpec((1, 1, tq1, Dh), lambda b, h, q: (b, h, q, 0)),
                  pl.BlockSpec((1, 1, S, Dh), lambda b, h, q: (b, h, 0, 0))],
        out_specs=pl.BlockSpec((1, 1, tq1, S), lambda b, h, q: (b, h, q, 0)),
        compiler_params=pltpu.CompilerParams(
            dimension_semantics=("parallel", "parallel", "parallel"),
            vmem_limit_bytes=vmem_limit),
        cost_estimate=pl.CostEstimate(
            flops=2 * B * n_heads * S * S * Dh,
            transcendentals=0,
            bytes_accessed=in_item * B * n_heads * 2 * S * Dh
                           + score_item * B * n_heads * S * S),
    )(Q, K)

    # ---- SVD truncation (plain JAX; see TODO(synk) above).
    rank = max(1, int(S * rank_ratio))
    rank = min(rank, max_rank, S)
    r_pad = min(_round_up(rank, 128), S)     # zero-pad (exact) for MXU alignment

    U, Sv, Vh = jnp.linalg.svd(scores.astype(jnp.float32), full_matrices=False)
    # Fold 1/sqrt(Dh) into the singular values (SVD(c*A) = (U, c*S, Vh), exact)
    # and split sqrt(.) between U and Vh so neither bf16 operand carries the
    # full O(S) singular-value magnitude.
    sq = jnp.sqrt(Sv[..., :rank] * scale)                 # [B,H,r]
    U_s = U[..., :rank] * sq[..., None, :]                # [B,H,S,r]
    Vh_s = Vh[..., :rank, :] * sq[..., :, None]           # [B,H,r,S]
    if r_pad > rank:
        U_s = jnp.pad(U_s, ((0, 0), (0, 0), (0, 0), (0, r_pad - rank)))
        Vh_s = jnp.pad(Vh_s, ((0, 0), (0, 0), (0, r_pad - rank), (0, 0)))
    U_s = U_s.astype(cd)
    Vh_s = Vh_s.astype(cd)

    # ---- Kernel 2: online-softmax reconstruction + attn @ V, head-grouped,
    #      k-tiled, lane-dense [B,S,D] output (no wrapper transpose).
    Hg = _pick_head_group(n_heads, Dh)
    tq2, tk2 = _pick_attn_tiles(S, Dh, r_pad, Hg, in_item, out_item, vmem_budget)
    n_q2, n_k2 = S // tq2, S // tk2
    approx_recip = not is_f32

    out = pl.pallas_call(
        functools.partial(_attn_kernel, approx_recip=approx_recip),
        out_shape=jax.ShapeDtypeStruct((B, S, D), out_dtype),
        grid=(B, n_heads // Hg, n_q2, n_k2),
        in_specs=[
            pl.BlockSpec((1, Hg, tq2, r_pad), lambda b, g, q, k: (b, g, q, 0)),
            pl.BlockSpec((1, Hg, r_pad, tk2), lambda b, g, q, k: (b, g, 0, k)),
            pl.BlockSpec((1, Hg, tk2, Dh), lambda b, g, q, k: (b, g, k, 0)),
        ],
        out_specs=pl.BlockSpec((1, tq2, Hg * Dh), lambda b, g, q, k: (b, q, g)),
        scratch_shapes=[
            pltpu.VMEM((Hg, tq2, 1), jnp.float32),    # running max
            pltpu.VMEM((Hg, tq2, 1), jnp.float32),    # running sum
            pltpu.VMEM((Hg, tq2, Dh), jnp.float32),   # output accumulator
        ],
        compiler_params=pltpu.CompilerParams(
            dimension_semantics=("parallel", "parallel", "parallel", "arbitrary"),
            vmem_limit_bytes=vmem_limit),
        cost_estimate=pl.CostEstimate(
            flops=2 * B * n_heads * S * S * (r_pad + Dh),
            transcendentals=B * n_heads * S * S,
            bytes_accessed=in_item * B * n_heads * (2 * S * r_pad + S * Dh)
                           + out_item * B * S * D),
    )(U_s, Vh_s, V)

    return out


# --------------------------------------------------------------------------
# Pure-JAX references
# --------------------------------------------------------------------------
def _reference(query, key, value, *, n_heads, rank_ratio=0.1, max_rank=256,
               compute_dtype=None):
    """compute_dtype=None: faithful f32 mirror of the PyTorch forward.
    Otherwise: mirrors the kernel's quantization points (for bf16 checks)."""
    B, S, D = query.shape
    Dh = D // n_heads
    to_heads = lambda x: jnp.transpose(x.reshape(B, S, n_heads, Dh), (0, 2, 1, 3))
    rank = min(max(1, int(S * rank_ratio)), max_rank, S)
    hi = jax.lax.Precision.HIGHEST

    if compute_dtype is None:
        Q, K, V = to_heads(query), to_heads(key), to_heads(value)
        scores = jnp.einsum("bhqd,bhkd->bhqk", Q, K, precision=hi) / np.sqrt(Dh)
        U, Sv, Vh = jnp.linalg.svd(scores, full_matrices=False)
        low = jnp.einsum("bhqr,bhr,bhrk->bhqk",
                         U[..., :rank], Sv[..., :rank], Vh[..., :rank, :],
                         precision=hi)
        attn = jax.nn.softmax(low, axis=-1)
        out = jnp.einsum("bhqk,bhkd->bhqd", attn, V, precision=hi)
    else:
        cdt = jnp.dtype(compute_dtype)
        Q = to_heads(query).astype(cdt)
        K = to_heads(key).astype(cdt)
        V = to_heads(value).astype(cdt)
        scores = jnp.einsum("bhqd,bhkd->bhqk", Q, K,
                            preferred_element_type=jnp.float32).astype(cdt)
        scores = scores.astype(jnp.float32)
        U, Sv, Vh = jnp.linalg.svd(scores, full_matrices=False)
        sq = jnp.sqrt(Sv[..., :rank] / np.sqrt(Dh))
        U_s = (U[..., :rank] * sq[..., None, :]).astype(cdt)
        Vh_s = (Vh[..., :rank, :] * sq[..., :, None]).astype(cdt)
        low = jnp.einsum("bhqr,bhrk->bhqk", U_s, Vh_s,
                         preferred_element_type=jnp.float32)
        attn = jax.nn.softmax(low, axis=-1)
        out = jnp.einsum("bhqk,bhkd->bhqd", attn.astype(cdt), V,
                         preferred_element_type=jnp.float32)

    out = jnp.transpose(out, (0, 2, 1, 3)).reshape(B, S, D)
    return out.astype(query.dtype)


if __name__ == "__main__":
    # Small shapes: batch=2, seq=8, d_model=32, n_heads=4 (d_head=8).
    B, S, D, H = 2, 8, 32, 4
    root = jax.random.PRNGKey(0)
    kq, kk, kv = jax.random.split(root, 3)
    query = jax.random.normal(kq, (B, S, D), dtype=jnp.float32)
    key_t = jax.random.normal(kk, (B, S, D), dtype=jnp.float32)
    value = jax.random.normal(kv, (B, S, D), dtype=jnp.float32)

    # f32 compute path: check against the faithful pure-JAX reference.
    out_f32 = jax.block_until_ready(
        low_rank_attention(query, key_t, value, n_heads=H, rank_ratio=0.1,
                           compute_dtype=jnp.float32))
    ref_f32 = _reference(query, key_t, value, n_heads=H, rank_ratio=0.1)
    np.testing.assert_allclose(np.asarray(out_f32), np.asarray(ref_f32),
                               rtol=5e-3, atol=5e-3)

    # Default bf16 MXU path: check against a quantization-matched reference.
    out_bf16 = jax.block_until_ready(
        low_rank_attention(query, key_t, value, n_heads=H, rank_ratio=0.1))
    ref_bf16 = _reference(query, key_t, value, n_heads=H, rank_ratio=0.1,
                          compute_dtype=jnp.bfloat16)
    np.testing.assert_allclose(np.asarray(out_bf16), np.asarray(ref_bf16),
                               rtol=1e-1, atol=1e-1)

    assert out_f32.shape == (B, S, D)
    assert out_bf16.shape == (B, S, D)
    print("KERNEL_OK")
</pallas_src>

<mosaic_0001>
module attributes {stable_mosaic.version = 11 : i64} {
  func.func @_scores_kernel(%arg0: i32, %arg1: i32, %arg2: i32, %arg3: memref<1x1x8x8xf32, #tpu.memory_space<vmem>>, %arg4: memref<1x1x8x8xf32, #tpu.memory_space<vmem>>, %arg5: memref<1x1x8x8xf32, #tpu.memory_space<vmem>>) attributes {dimension_semantics = [#tpu.dimension_semantics<parallel>, #tpu.dimension_semantics<parallel>, #tpu.dimension_semantics<parallel>], iteration_bounds = array<i64: 2, 4, 1>, scalar_prefetch = 0 : i64, scratch_operands = 0 : i64, tpu.core_type = #tpu.core_type<tc>, window_params = [{transform_indices = @transform_0, window_bounds = array<i64: 1, 1, 8, 8>}, {transform_indices = @transform_1, window_bounds = array<i64: 1, 1, 8, 8>}, {transform_indices = @transform_2, window_bounds = array<i64: 1, 1, 8, 8>}]} {
    %c0 = arith.constant 0 : index
    %c0_0 = arith.constant 0 : index
    %c0_1 = arith.constant 0 : index
    %c0_2 = arith.constant 0 : index
    %0 = vector.load %arg3[%c0, %c0_0, %c0_1, %c0_2] : memref<1x1x8x8xf32, #tpu.memory_space<vmem>>, vector<1x1x8x8xf32>
    %1 = vector.shape_cast %0 : vector<1x1x8x8xf32> to vector<8x8xf32>
    %c0_3 = arith.constant 0 : index
    %c0_4 = arith.constant 0 : index
    %c0_5 = arith.constant 0 : index
    %c0_6 = arith.constant 0 : index
    %2 = vector.load %arg4[%c0_3, %c0_4, %c0_5, %c0_6] : memref<1x1x8x8xf32, #tpu.memory_space<vmem>>, vector<1x1x8x8xf32>
    %3 = vector.shape_cast %2 : vector<1x1x8x8xf32> to vector<8x8xf32>
    %cst = arith.constant dense<0.000000e+00> : vector<8x8xf32>
    %4 = tpu.matmul %1, %3, %cst {dimension_numbers = #tpu.dot_dimension_numbers<[1], [1], [0], [0], [0, 0, 1, 0], [], []>} : vector<8x8xf32>, vector<8x8xf32>, vector<8x8xf32> -> vector<8x8xf32>
    %c0_7 = arith.constant 0 : index
    %c0_8 = arith.constant 0 : index
    %c0_9 = arith.constant 0 : index
    %c0_10 = arith.constant 0 : index
    %5 = vector.load %arg5[%c0_7, %c0_8, %c0_9, %c0_10] : memref<1x1x8x8xf32, #tpu.memory_space<vmem>>, vector<1x1x8x8xf32>
    %6 = vector.shape_cast %5 : vector<1x1x8x8xf32> to vector<8x8xf32>
    %7 = vector.shape_cast %4 : vector<8x8xf32> to vector<1x1x8x8xf32>
    tpu.vector_store %arg5[%c0_7, %c0_8, %c0_9, %c0_10], %7 {strides = array<i32>} : memref<1x1x8x8xf32, #tpu.memory_space<vmem>>, vector<1x1x8x8xf32>,
    return
  }
  func.func @transform_0(%arg0: i32, %arg1: i32, %arg2: i32) -> (i32, i32, i32, i32) {
    %c0_i32 = arith.constant 0 : i32
    %c0_i32_0 = arith.constant 0 : i32
    return %arg0, %arg1, %arg2, %c0_i32 : i32, i32, i32, i32
  }
  func.func @transform_1(%arg0: i32, %arg1: i32, %arg2: i32) -> (i32, i32, i32, i32) {
    %c0_i32 = arith.constant 0 : i32
    %c0_i32_0 = arith.constant 0 : i32
    %c0_i32_1 = arith.constant 0 : i32
    return %arg0, %arg1, %c0_i32, %c0_i32_0 : i32, i32, i32, i32
  }
  func.func @transform_2(%arg0: i32, %arg1: i32, %arg2: i32) -> (i32, i32, i32, i32) {
    %c0_i32 = arith.constant 0 : i32
    %c0_i32_0 = arith.constant 0 : i32
    return %arg0, %arg1, %arg2, %c0_i32 : i32, i32, i32, i32
  }
}

</mosaic_0001>

<llo_original>
// kernel: tpu_custom_call.1
$region0: #{tpu_custom_call.1}
  #allocation0 [shape = 'u32[]', space=smem, size = 0x4, offset = 0x4, fixed_abs, tag = 'smem constant byte address 0x4 - core index']
  #allocation1 [shape = 'u32[72,128]{1,0:T(1,128)}', space=vmem, size = 0x9000, scoped, tag = 'internal scratch']
  %s0 = inlined_call_operand.hbm [shape: f32[2,4,8,8], index: 0, kind: input, shape index: {}]
  %s1 = inlined_call_operand.hbm [shape: f32[2,4,8,8], index: 1, kind: input, shape index: {}]
  %s2 = inlined_call_operand.hbm [shape: f32[2,4,8,8], index: 2, kind: output, shape index: {}]
  %s3 = sld [smem:[#allocation0]]
  $region49: #{tpu_custom_call.1} parent=0
    _
  %s5 = ssub.s32 1, %s3
  %s6 = scalar_select 0, %s5, %s3
  $region1: #{tpu_custom_call.1} parent=0
    #allocation2 [shape = 'u8[8192]{0}', space=vmem, size = 0x2000, scoped, tag = 'input window, operand 0']
    #allocation3 [shape = 's32[2]{0}', space=sflag, size = 0x8, scoped, tag = 'scoped memory for tpu_custom_call.1']
    #allocation4 [shape = 's32[2]{0}', space=sflag, size = 0x8, scoped, tag = 'scoped memory for tpu_custom_call.1']
    #allocation5 [shape = 'u8[8192]{0}', space=vmem, size = 0x2000, scoped, tag = 'input window, operand 1']
    #allocation6 [shape = 's32[2]{0}', space=sflag, size = 0x8, scoped, tag = 'scoped memory for tpu_custom_call.1']
    #allocation7 [shape = 'u8[8192]{0}', space=vmem, size = 0x2000, scoped, tag = 'output window, operand 0']
    %7 = vsyncpa [#allocation3], 0
    %s8 = scalar_lea.sflag [#allocation3], 1
    %9 = vsyncpa %s8, 0
    %10 = vsyncpa [#allocation6], 0
    %s11 = scalar_lea.sflag [#allocation6], 1
    %12 = vsyncpa %s11, 0
    %13 = vsyncpa [#allocation4], 0
    %s14 = scalar_lea.sflag [#allocation4], 1
    %15 = vsyncpa %s14, 0
    loop: start=0, step=1, limit=10
    $region2: #{tpu_custom_call.1} parent=1 // loop_pre_header
      _
    $region3: #{tpu_custom_call.1} parent=1 // loop_header
      %s17 = sphi 0, %s21
      %p18 = scmp.ge.s32.totalorder %s17, 10
      %s24 = sphi 0, %s43
      %s25 = sphi 0, %s39
      %s26 = sphi 0, %s35
      %s27 = sphi 0, %s24
      %s28 = sphi 0, %s25
      %s29 = sphi 0, %s26
      %s30 = sphi 0, %s27
      %s31 = sphi 0, %s28
      %s32 = sphi 0, %s29
      %s50 = sphi 0, %s52
      %s53 = sphi 0, %s50
      %s54 = sphi 0, %s53
      %s70 = sphi 0, %s54
      %s78 = sphi 0, %s80
      %s81 = sphi 0, %s78
      %s82 = sphi 0, %s81
      %s98 = sphi 0, %s82
      %s108 = sphi 0, %s110
      %s111 = sphi 0, %s108
      %s112 = sphi 0, %s111
      %s128 = sphi 0, %s112
    $region4: #{tpu_custom_call.1} parent=1 // loop_header_branch
      %20 = sbr.rel (%p18) target = $region8
    $region5: #{tpu_custom_call.1} parent=1 // loop_body
      %s22 = ssub.s32 %s17, 1
      %s23 = ssub.s32 %s17, 2
      %s33 = sadd.s32 1, %s26
      %p34 = scmp.ge.s32.totalorder %s33, 1
      %s35 = scalar_select %p34, 0, %s33
      %s36 = sadd.s32 1, %s25
      %s37 = scalar_select %p34, %s36, %s25
      %p38 = scmp.ge.s32.totalorder %s37, 4
      %s39 = scalar_select %p38, 0, %s37
      %s40 = sadd.s32 1, %s24
      %s41 = scalar_select %p38, %s40, %s24
      %p42 = scmp.ge.s32.totalorder %s41, 2
      %s43 = scalar_select %p42, 0, %s41
      %s44 = ssub.s32 %s24, %s43
      %s45 = ssub.s32 %s25, %s39
      %s46 = sor.u32 %s44, %s45
      %s47 = ssub.s32 %s26, %s35
      %s48 = sor.u32 %s46, %s47
      %p49 = scmp.eq.s32.totalorder %s48, 0
      %s51 = sadd.s32 %s50, 1
      %s52 = scalar_select %p49, %s50, %s51
      %p55 = pneg %p49
      %p56 = scmp.eq.s32.totalorder %s17, 7
      %p57 = por %p55, %p56
      %p58 = scmp.ne.s32.totalorder %s50, %s53
      %p59 = scmp.eq.s32.totalorder %s17, 0
      %p60 = por %p58, %p59
      %p61 = scmp.ne.s32.totalorder %s50, %s53
      %p62 = scmp.eq.s32.totalorder %s22, 7
      %p63 = por %p61, %p62
      %p64 = scmp.ne.s32.totalorder %s53, %s54
      %p65 = scmp.eq.s32.totalorder %s22, 0
      %p66 = por %p64, %p65
      %p67 = scmp.ne.s32.totalorder %s53, %s54
      %p68 = scmp.eq.s32.totalorder %s23, 7
      %p69 = por %p67, %p68
      %p71 = scmp.ne.s32.totalorder %s54, %s70
      %p72 = scmp.eq.s32.totalorder %s23, 0
      %p73 = por %p71, %p72
      %s74 = ssub.s32 %s24, %s43
      %s75 = ssub.s32 %s25, %s39
      %s76 = sor.u32 %s74, %s75
      %p77 = scmp.eq.s32.totalorder %s76, 0
      %s79 = sadd.s32 %s78, 1
      %s80 = scalar_select %p77, %s78, %s79
      %p83 = pneg %p77
      %p84 = scmp.eq.s32.totalorder %s17, 7
      %p85 = por %p83, %p84
      %p86 = scmp.ne.s32.totalorder %s78, %s81
      %p87 = scmp.eq.s32.totalorder %s17, 0
      %p88 = por %p86, %p87
      %p89 = scmp.ne.s32.totalorder %s78, %s81
      %p90 = scmp.eq.s32.totalorder %s22, 7
      %p91 = por %p89, %p90
      %p92 = scmp.ne.s32.totalorder %s81, %s82
      %p93 = scmp.eq.s32.totalorder %s22, 0
      %p94 = por %p92, %p93
      %p95 = scmp.ne.s32.totalorder %s81, %s82
      %p96 = scmp.eq.s32.totalorder %s23, 7
      %p97 = por %p95, %p96
      %p99 = scmp.ne.s32.totalorder %s82, %s98
      %p100 = scmp.eq.s32.totalorder %s23, 0
      %p101 = por %p99, %p100
      %s102 = ssub.s32 %s24, %s43
      %s103 = ssub.s32 %s25, %s39
      %s104 = sor.u32 %s102, %s103
      %s105 = ssub.s32 %s26, %s35
      %s106 = sor.u32 %s104, %s105
      %p107 = scmp.eq.s32.totalorder %s106, 0
      %s109 = sadd.s32 %s108, 1
      %s110 = scalar_select %p107, %s108, %s109
      %p113 = pneg %p107
      %p114 = scmp.eq.s32.totalorder %s17, 7
      %p115 = por %p113, %p114
      %p116 = scmp.ne.s32.totalorder %s108, %s111
      %p117 = scmp.eq.s32.totalorder %s17, 0
      %p118 = por %p116, %p117
      %p119 = scmp.ne.s32.totalorder %s108, %s111
      %p120 = scmp.eq.s32.totalorder %s22, 7
      %p121 = por %p119, %p120
      %p122 = scmp.ne.s32.totalorder %s111, %s112
      %p123 = scmp.eq.s32.totalorder %s22, 0
      %p124 = por %p122, %p123
      %p125 = scmp.ne.s32.totalorder %s111, %s112
      %p126 = scmp.eq.s32.totalorder %s23, 7
      %p127 = por %p125, %p126
      %p129 = scmp.ne.s32.totalorder %s112, %s128
      %p130 = scmp.eq.s32.totalorder %s23, 0
      %p131 = por %p129, %p130
      %p132 = scmp.le.s32.totalorder 1, %s17
      %p133 = scmp.lt.s32.totalorder %s17, 9
      %p134 = pnand %p132, %p133
      %p135 = pneg %p134
      // Predicated region
      $region9: #{tpu_custom_call.1} parent=5 // pred_check
        _
      $region10: #{tpu_custom_call.1} parent=5 // pred_check_branch
        %137 = sbr.rel (%p134) target = $region12
      $region11: #{tpu_custom_call.1} parent=5 // pred_region
        %s138 = ssub.s32 %s17, 1
      $region12: #{tpu_custom_call.1} parent=5 // pred_fallthru
        _
      %p139 = scmp.lt.s32.totalorder %s17, 8
      // Predicated region
      $region13: #{tpu_custom_call.1} parent=5 // pred_check
        %p140 = pneg %p139
      $region14: #{tpu_custom_call.1} parent=5 // pred_check_branch
        %142 = sbr.rel (%p140) target = $region16
      $region15: #{tpu_custom_call.1} parent=5 // pred_region
        // Predicated region
        $region17: #{tpu_custom_call.1} parent=15 // pred_check
          %p143 = pneg %p60
        $region18: #{tpu_custom_call.1} parent=15 // pred_check_branch
          %145 = sbr.rel (%p143) target = $region20
        $region19: #{tpu_custom_call.1} parent=15 // pred_region
          %s146 = sand.u32 %s50, 1
          %s147 = scalar_lea.sflag [#allocation3], %s146
          %s148 = sand.u32 %s50, 1
          %s149 = smul.addr %s148, 8
          %s150 = scalar_lea.vmem [#allocation2], %s149
          %152 = vsyncadd %s147, 0
          %s153 = sadd.s32 %s26, %s25
          %s154 = smul.addr %s24, 4
          %s155 = sadd.s32 %s153, %s154
          %s156 = smul.addr %s155, 8
          %s157 = scalar_lea.hbm %s0, %s156
          %s159 = sshll.u32 %s157, 4
          %s160 = int_to_ptr.hbm [resolvable:$true] %s159
          %s161 = sshll.u32 %s150, 4
          %s162 = int_to_ptr.vmem [resolvable:$true] %s161
          %164 = dma.hbm_to_vmem [thread:$0]  %s160, 128, %s162, %s147
        $region20: #{tpu_custom_call.1} parent=15 // pred_fallthru
          _
        // Predicated region
        $region21: #{tpu_custom_call.1} parent=15 // pred_check
          %p165 = pneg %p88
        $region22: #{tpu_custom_call.1} parent=15 // pred_check_branch
          %167 = sbr.rel (%p165) target = $region24
        $region23: #{tpu_custom_call.1} parent=15 // pred_region
          %s168 = sand.u32 %s78, 1
          %s169 = scalar_lea.sflag [#allocation6], %s168
          %s170 = sand.u32 %s78, 1
          %s171 = smul.addr %s170, 8
          %s172 = scalar_lea.vmem [#allocation5], %s171
          %174 = vsyncadd %s169, 0
          %s175 = smul.addr %s24, 4
          %s176 = sadd.s32 %s25, %s175
          %s177 = smul.addr %s176, 8
          %s178 = scalar_lea.hbm %s1, %s177
          %s180 = sshll.u32 %s178, 4
          %s181 = int_to_ptr.hbm [resolvable:$true] %s180
          %s182 = sshll.u32 %s172, 4
          %s183 = int_to_ptr.vmem [resolvable:$true] %s182
          %185 = dma.hbm_to_vmem [thread:$0]  %s181, 128, %s183, %s169
        $region24: #{tpu_custom_call.1} parent=15 // pred_fallthru
          _
      $region16: #{tpu_custom_call.1} parent=5 // pred_fallthru
        _
      %p186 = scmp.le.s32.totalorder 1, %s17
      %p187 = scmp.lt.s32.totalorder %s17, 9
      %p188 = pnand %p186, %p187
      %p189 = pneg %p188
      // Predicated region
      $region25: #{tpu_custom_call.1} parent=5 // pred_check
        _
      $region26: #{tpu_custom_call.1} parent=5 // pred_check_branch
        %191 = sbr.rel (%p188) target = $region28
      $region27: #{tpu_custom_call.1} parent=5 // pred_region
        %s192 = ssub.s32 %s17, 1
        %s193 = sand.u32 %s53, 1
        %s194 = scalar_lea.sflag [#allocation3], %s193
        %s195 = sand.u32 %s53, 1
        %s196 = smul.addr %s195, 8
        %s197 = scalar_lea.vmem [#allocation2], %s196
        // Predicated region
        $region29: #{tpu_custom_call.1} parent=27 // pred_check
          %p198 = pneg %p66
        $region30: #{tpu_custom_call.1} parent=27 // pred_check_branch
          %200 = sbr.rel (%p198) target = $region32
        $region31: #{tpu_custom_call.1} parent=27 // pred_region
          %202 = dma.done %s194, 128
        $region32: #{tpu_custom_call.1} parent=27 // pred_fallthru
          _
        %s203 = sand.u32 %s81, 1
        %s204 = scalar_lea.sflag [#allocation6], %s203
        %s205 = sand.u32 %s81, 1
        %s206 = smul.addr %s205, 8
        %s207 = scalar_lea.vmem [#allocation5], %s206
        // Predicated region
        $region33: #{tpu_custom_call.1} parent=27 // pred_check
          %p208 = pneg %p94
        $region34: #{tpu_custom_call.1} parent=27 // pred_check_branch
          %210 = sbr.rel (%p208) target = $region36
        $region35: #{tpu_custom_call.1} parent=27 // pred_region
          %212 = dma.done %s204, 128
        $region36: #{tpu_custom_call.1} parent=27 // pred_fallthru
          _
        %s213 = sand.u32 %s53, 1
        %s214 = scalar_lea.sflag [#allocation3], %s213
        %s215 = sand.u32 %s53, 1
        %s216 = smul.addr %s215, 8
        %s217 = scalar_lea.vmem [#allocation2], %s216
        %p218 = pneg %p66
        %p219 = pneg %p63
        %s220 = sand.u32 %s81, 1
        %s221 = scalar_lea.sflag [#allocation6], %s220
        %s222 = sand.u32 %s81, 1
        %s223 = smul.addr %s222, 8
        %s224 = scalar_lea.vmem [#allocation5], %s223
        %p225 = pneg %p94
        %p226 = pneg %p91
        %p227 = pneg %p124
        %p228 = pneg %p121
        %s229 = sand.u32 %s111, 1
        %s230 = scalar_lea.sflag [#allocation4], %s229
        %s231 = sand.u32 %s111, 1
        %s232 = smul.addr %s231, 8
        %s233 = scalar_lea.vmem [#allocation7], %s232
        %v234 = vld [vmem:[%s197] sm:$0xff]
        %v235 = vld [vmem:[%s207] sm:$0xff]
        %vm236 = vcmask 64512
        %v238 = vsel %vm236, %v234, 0
        %v241 = vsel %vm236, %v235, 0
        %243 = vmatpush.xpose.msra.mxu0 0.0
        %244 = vmatpush.xpose.msra.mxu0 0.0
        %245 = vmatpush.xpose.msra.mxu0 0.0
        %246 = vmatpush.xpose.msra.mxu0 0.0
        %247 = vmatpush.xpose.msra.mxu0 0.0
        %248 = vmatpush.xpose.msra.mxu0 0.0
        %249 = vmatpush.xpose.msra.mxu0 0.0
        %250 = vmatpush.xpose.msra.mxu0 0.0
        %251 = vmatpush.xpose.msra.mxu0 0.0
        %252 = vmatpush.xpose.msra.mxu0 0.0
        %253 = vmatpush.xpose.msra.mxu0 0.0
        %254 = vmatpush.xpose.msra.mxu0 0.0
        %255 = vmatpush.xpose.msra.mxu0 0.0
        %256 = vmatpush.xpose.msra.mxu0 0.0
        %257 = vmatpush.xpose.msra.mxu0 0.0
        %258 = vmatpush.xpose.msra.mxu0 %v241
        %259 = vmatmul.f32.gmra.mxu0 %v238
        %v260 = vpop.f32.mrf.mxu0
        %v261 = vadd.f32 0.0, %v260
        %262 = vdwg.mxu0
        %263 = vst.msk [vmem:[%s233] sm:$0xff] %vm236, %v261
        %s264 = sand.u32 %s111, 1
        %s265 = scalar_lea.sflag [#allocation4], %s264
        %s266 = sand.u32 %s111, 1
        %s267 = smul.addr %s266, 8
        %s268 = scalar_lea.vmem [#allocation7], %s267
        // Predicated region
        $region37: #{tpu_custom_call.1} parent=27 // pred_check
          %p269 = pneg %p121
        $region38: #{tpu_custom_call.1} parent=27 // pred_check_branch
          %271 = sbr.rel (%p269) target = $region40
        $region39: #{tpu_custom_call.1} parent=27 // pred_region
          %273 = vsyncadd %s265, 0
          %s274 = sadd.s32 %s29, %s28
          %s275 = smul.addr %s27, 4
          %s276 = sadd.s32 %s274, %s275
          %s277 = smul.addr %s276, 8
          %s278 = scalar_lea.hbm %s2, %s277
          %s280 = sshll.u32 %s268, 4
          %s281 = int_to_ptr.vmem [resolvable:$true] %s280
          %s282 = sshll.u32 %s278, 4
          %s283 = int_to_ptr.hbm [resolvable:$true] %s282
          %285 = dma.vmem_to_hbm [thread:$0]  %s281, 128, %s283, %s265
        $region40: #{tpu_custom_call.1} parent=27 // pred_fallthru
          _
      $region28: #{tpu_custom_call.1} parent=5 // pred_fallthru
        _
      %p286 = scmp.le.s32.totalorder 2, %s17
      // Predicated region
      $region41: #{tpu_custom_call.1} parent=5 // pred_check
        %p287 = pneg %p286
      $region42: #{tpu_custom_call.1} parent=5 // pred_check_branch
        %289 = sbr.rel (%p287) target = $region44
      $region43: #{tpu_custom_call.1} parent=5 // pred_region
        %s290 = ssub.s32 %s17, 2
        // Predicated region
        $region45: #{tpu_custom_call.1} parent=43 // pred_check
          %p291 = pneg %p127
        $region46: #{tpu_custom_call.1} parent=43 // pred_check_branch
          %293 = sbr.rel (%p291) target = $region48
        $region47: #{tpu_custom_call.1} parent=43 // pred_region
          %s294 = sand.u32 %s112, 1
          %s295 = scalar_lea.sflag [#allocation4], %s294
          %s296 = sand.u32 %s112, 1
          %s297 = smul.addr %s296, 8
          %s298 = scalar_lea.vmem [#allocation7], %s297
          %300 = dma.done %s295, 128
        $region48: #{tpu_custom_call.1} parent=43 // pred_fallthru
          _
      $region44: #{tpu_custom_call.1} parent=5 // pred_fallthru
        _
    $region6: #{tpu_custom_call.1} parent=1 // loop_footer
      %s21 = sadd.s32 1, %s17
    $region7: #{tpu_custom_call.1} parent=1 // loop_footer_branch
      %16 = sbr.rel target = $region3
    $region8: #{tpu_custom_call.1} parent=1 // loop_exit
      _
    %301 = vsyncpa [#allocation3], 1
    %s302 = scalar_lea.sflag [#allocation3], 1
    %303 = vsyncpa %s302, 1
    %304 = vsyncpa [#allocation6], 1
    %s305 = scalar_lea.sflag [#allocation6], 1
    %306 = vsyncpa %s305, 1
    %307 = vsyncpa [#allocation4], 1
    %s308 = scalar_lea.sflag [#allocation4], 1
    %309 = vsyncpa %s308, 1

</llo_original>
